<compile_context>
chip_gen: v7x
topology: tpu7x:2x2x1
jax: 0.10.0
libtpu: 0.0.40
codegen_flags: <defaults>
</compile_context>

<pallas_src>
import jax
import jax.numpy as jnp
from jax.experimental import pallas as pl
from jax.experimental.pallas import tpu as pltpu


def value_net_kernel(xt_ref, w1_ref, b1_ref, w2_ref, b2_ref, out_ref):
    # fc1 on the MXU: (H, S) @ (S, TB) -> (H, TB), f32 accumulation.
    # Default precision already matches the f32 reference to well under 1e-5
    # at K=4; pass precision=jax.lax.Precision.HIGHEST here if bit-closer
    # parity with a float32 PyTorch fc1 is ever required (negligible cost).
    h = jnp.dot(w1_ref[...], xt_ref[...], preferred_element_type=jnp.float32)
    # Bias (H, 1) broadcast over the lane (batch) axis + ReLU, on the VPU.
    h = jnp.maximum(h + b1_ref[...], 0.0)
    # fc2 on the MXU as (8, H) @ (H, TB); rows 1..7 of w2 are zero padding, so
    # row 0 of the result is the value row.  Keeps VALU work minimal.
    v = jnp.dot(w2_ref[...], h, preferred_element_type=jnp.float32)
    # b2 is a scalar in SMEM -> scalar add; output stays lane-dense (1, TB).
    out_ref[...] = (v[0:1, :] + b2_ref[0, 0]).astype(out_ref.dtype)


def _round_up(x, m):
    return ((x + m - 1) // m) * m


def value_net_forward_t(xt, w1, b1, w2, b2, *, batch_tile=16384,
                        single_block_max=512):
    """ValueNet forward on pre-transposed input.

    xt: (S, B) float32 -- batch on the 128-lane axis (preferred producer
        layout; no wrapper-side relayout happens here).
    w1: (H, S), b1: (H,)   -- PyTorch nn.Linear(state_dim, hidden_dim) layout
    w2: (1, H), b2: (1,)   -- PyTorch nn.Linear(hidden_dim, 1) layout
    Returns (B, 1) float32.
    """
    S, B = xt.shape
    H = w1.shape[0]

    b1c = b1.reshape(H, 1)                                  # lane-broadcast column
    w2p = jnp.zeros((8, H), w2.dtype).at[0, :].set(w2.reshape(H))  # sublane-pad
    b2s = b2.reshape(1, 1)                                  # scalar -> SMEM

    if B <= single_block_max:
        # Tiny problem: single block, no grid / pipelining machinery.
        out = pl.pallas_call(
            value_net_kernel,
            out_shape=jax.ShapeDtypeStruct((1, B), jnp.float32),
            in_specs=[
                pl.BlockSpec(memory_space=pltpu.MemorySpace.VMEM),   # x^T
                pl.BlockSpec(memory_space=pltpu.MemorySpace.VMEM),   # w1
                pl.BlockSpec(memory_space=pltpu.MemorySpace.VMEM),   # b1
                pl.BlockSpec(memory_space=pltpu.MemorySpace.VMEM),   # w2 (8,H)
                pl.BlockSpec(memory_space=pltpu.MemorySpace.SMEM),   # b2 scalar
            ],
            out_specs=pl.BlockSpec(memory_space=pltpu.MemorySpace.VMEM),
        )(xt, w1, b1c, w2p, b2s)
        return out.reshape(B, 1)

    # Grid path: tile the lane (batch) axis.  Big tiles amortize the ~0.35 us
    # per-step overhead; capping the tile at 128-aligned cdiv(B, 2) guarantees
    # >= 2 grid steps so "parallel" can shard across both v7x TensorCores.
    # Weights / biases are pinned to block (0, 0) -> resident, never re-DMA'd.
    bt = max(128, (batch_tile // 128) * 128)
    tile = min(bt, _round_up(pl.cdiv(B, 2), 128))
    nb = pl.cdiv(B, tile)          # ragged last block: writeback masked by Pallas

    out = pl.pallas_call(
        value_net_kernel,
        out_shape=jax.ShapeDtypeStruct((1, B), jnp.float32),
        grid=(nb,),
        in_specs=[
            pl.BlockSpec((S, tile), lambda i: (0, i)),                # x^T tile
            pl.BlockSpec((H, S), lambda i: (0, 0)),                   # w1 resident
            pl.BlockSpec((H, 1), lambda i: (0, 0)),                   # b1 resident
            pl.BlockSpec((8, H), lambda i: (0, 0)),                   # w2 resident
            pl.BlockSpec((1, 1), lambda i: (0, 0),
                         memory_space=pltpu.MemorySpace.SMEM),        # b2 scalar
        ],
        out_specs=pl.BlockSpec((1, tile), lambda i: (0, i)),          # lane-dense
        compiler_params=pltpu.CompilerParams(
            dimension_semantics=("parallel",),
        ),
    )(xt, w1, b1c, w2p, b2s)
    return out.reshape(B, 1)


def value_net_forward(x, w1, b1, w2, b2, **kwargs):
    """PyTorch-layout entry point: x is (B, S).

    Does exactly one relayout (x.T) so batch sits on the lane axis; there is
    no pad and no output slice copy anymore.  If the producer can emit (S, B)
    directly, call value_net_forward_t instead and skip even this copy.
    """
    return value_net_forward_t(x.T, w1, b1, w2, b2, **kwargs)


def init_params(key, state_dim, hidden_dim):
    """Deterministic init matching PyTorch nn.Linear layouts exactly."""
    k1, k2, k3, k4 = jax.random.split(key, 4)
    bound1 = 1.0 / jnp.sqrt(state_dim)
    bound2 = 1.0 / jnp.sqrt(hidden_dim)
    w1 = jax.random.uniform(k1, (hidden_dim, state_dim),
                            minval=-bound1, maxval=bound1, dtype=jnp.float32)
    b1 = jax.random.uniform(k2, (hidden_dim,),
                            minval=-bound1, maxval=bound1, dtype=jnp.float32)
    w2 = jax.random.uniform(k3, (1, hidden_dim),
                            minval=-bound2, maxval=bound2, dtype=jnp.float32)
    b2 = jax.random.uniform(k4, (1,),
                            minval=-bound2, maxval=bound2, dtype=jnp.float32)
    return w1, b1, w2, b2


def value_net_ref(x, w1, b1, w2, b2):
    h = jnp.maximum(x @ w1.T + b1, 0.0)
    return h @ w2.T + b2


if __name__ == "__main__":
    STATE_DIM, HIDDEN_DIM = 4, 32

    key = jax.random.PRNGKey(0)
    kx_small, kx_large, kp = jax.random.split(key, 3)
    w1, b1, w2, b2 = init_params(kp, STATE_DIM, HIDDEN_DIM)

    # Small batch -> single-block (no-grid) path.
    x_small = jax.random.normal(kx_small, (8, STATE_DIM), dtype=jnp.float32)
    out_small = jax.block_until_ready(value_net_forward(x_small, w1, b1, w2, b2))
    ref_small = value_net_ref(x_small, w1, b1, w2, b2)
    assert out_small.shape == (8, 1), out_small.shape
    assert jnp.allclose(out_small, ref_small, atol=1e-5, rtol=1e-5)

    # Larger, non-tile-multiple batch -> grid path with >=2 "parallel" steps
    # and a ragged (masked) last block; no jnp.pad anywhere.
    x_large = jax.random.normal(kx_large, (1000, STATE_DIM), dtype=jnp.float32)
    out_large = jax.block_until_ready(value_net_forward(x_large, w1, b1, w2, b2))
    ref_large = value_net_ref(x_large, w1, b1, w2, b2)
    assert out_large.shape == (1000, 1), out_large.shape
    assert jnp.allclose(out_large, ref_large, atol=1e-5, rtol=1e-5)

    print("KERNEL_OK")
</pallas_src>

<mosaic_0001>
module attributes {stable_mosaic.version = 11 : i64} {
  func.func @value_net_kernel(%arg0: memref<4x8xf32, #tpu.memory_space<vmem>>, %arg1: memref<32x4xf32, #tpu.memory_space<vmem>>, %arg2: memref<32x1xf32, #tpu.memory_space<vmem>>, %arg3: memref<8x32xf32, #tpu.memory_space<vmem>>, %arg4: memref<1x1xf32, #tpu.memory_space<smem>>, %arg5: memref<1x8xf32, #tpu.memory_space<vmem>>) attributes {dimension_semantics = [], scalar_prefetch = 0 : i64, scratch_operands = 0 : i64, tpu.core_type = #tpu.core_type<tc>} {
    %c0 = arith.constant 0 : index
    %c0_0 = arith.constant 0 : index
    %0 = vector.load %arg1[%c0, %c0_0] : memref<32x4xf32, #tpu.memory_space<vmem>>, vector<32x4xf32>
    %c0_1 = arith.constant 0 : index
    %c0_2 = arith.constant 0 : index
    %1 = vector.load %arg0[%c0_1, %c0_2] : memref<4x8xf32, #tpu.memory_space<vmem>>, vector<4x8xf32>
    %cst = arith.constant dense<0.000000e+00> : vector<32x8xf32>
    %2 = tpu.matmul %0, %1, %cst {dimension_numbers = #tpu.dot_dimension_numbers<[1], [0], [0], [1], [0, 0, 1, 1], [], []>} : vector<32x4xf32>, vector<4x8xf32>, vector<32x8xf32> -> vector<32x8xf32>
    %c0_3 = arith.constant 0 : index
    %c0_4 = arith.constant 0 : index
    %3 = vector.load %arg2[%c0_3, %c0_4] : memref<32x1xf32, #tpu.memory_space<vmem>>, vector<32x1xf32>
    %4 = vector.broadcast %3 : vector<32x1xf32> to vector<32x8xf32>
    %5 = arith.addf %2, %4 : vector<32x8xf32>
    %cst_5 = arith.constant 0.000000e+00 : f32
    %6 = vector.broadcast %cst_5 : f32 to vector<32x8xf32>
    %7 = arith.maximumf %5, %6 : vector<32x8xf32>
    %c0_6 = arith.constant 0 : index
    %c0_7 = arith.constant 0 : index
    %8 = vector.load %arg3[%c0_6, %c0_7] : memref<8x32xf32, #tpu.memory_space<vmem>>, vector<8x32xf32>
    %cst_8 = arith.constant dense<0.000000e+00> : vector<8x8xf32>
    %9 = tpu.matmul %8, %7, %cst_8 {dimension_numbers = #tpu.dot_dimension_numbers<[1], [0], [0], [1], [0, 0, 1, 1], [], []>} : vector<8x32xf32>, vector<32x8xf32>, vector<8x8xf32> -> vector<8x8xf32>
    %10 = vector.extract_strided_slice %9 {offsets = [0, 0], sizes = [1, 8], strides = [1, 1]} : vector<8x8xf32> to vector<1x8xf32>
    %c0_9 = arith.constant 0 : index
    %c0_10 = arith.constant 0 : index
    %11 = memref.load %arg4[%c0_9, %c0_10] : memref<1x1xf32, #tpu.memory_space<smem>>
    %12 = vector.broadcast %11 : f32 to vector<1x8xf32>
    %13 = arith.addf %10, %12 : vector<1x8xf32>
    %c0_11 = arith.constant 0 : index
    %c0_12 = arith.constant 0 : index
    %14 = vector.load %arg5[%c0_11, %c0_12] : memref<1x8xf32, #tpu.memory_space<vmem>>, vector<1x8xf32>
    tpu.vector_store %arg5[%c0_11, %c0_12], %13 {strides = array<i32>} : memref<1x8xf32, #tpu.memory_space<vmem>>, vector<1x8xf32>,
    return
  }
}

</mosaic_0001>

<llo_original>
// kernel: tpu_custom_call.1
$region0: #{tpu_custom_call.1}
  #allocation0 [shape = 'u32[]', space=smem, size = 0x4, offset = 0x4, fixed_abs, tag = 'smem constant byte address 0x4 - core index']
  #allocation1 [shape = 'u32[144,128]{1,0:T(1,128)}', space=vmem, size = 0x12000, scoped, tag = 'internal scratch']
  #allocation2 [shape = 'f32[1,1]{1,0:T(1,128)S(6)}', space=smem, size = 0x200, scoped, tag = 'scoped memory for tpu_custom_call.1']
  %s0 = inlined_call_operand.vmem [shape: f32[4,8], index: 0, kind: input, shape index: {}]
  %s1 = inlined_call_operand.vmem [shape: f32[32,4], index: 1, kind: input, shape index: {}]
  %s2 = inlined_call_operand.vmem [shape: f32[32,1], index: 2, kind: input, shape index: {}]
  %s3 = inlined_call_operand.vmem [shape: f32[8,32], index: 3, kind: input, shape index: {}]
  %s4 = inlined_call_operand.<no memory space> [shape: f32[1,1], index: 4, kind: input, shape index: {}]
  %s5 = inlined_call_operand.hbm [shape: f32[1,8], index: 5, kind: output, shape index: {}]
  %s6 = sld [smem:[#allocation0]]
  $region30: #{tpu_custom_call.1} parent=0
    _
  %s8 = ssub.s32 1, %s6
  %s9 = scalar_select 0, %s8, %s6
  %10 = sst [smem:[#allocation2]] %s4
  $region1: #{tpu_custom_call.1} parent=0
    #allocation3 [shape = 'u8[512]{0}', space=vmem, size = 0x400, scoped, tag = 'output window, operand 0, single buffered']
    #allocation4 [shape = 's32[1]{0}', space=sflag, size = 0x4, scoped, tag = 'scoped memory for tpu_custom_call.1']
    %11 = vsyncpa [#allocation4], 0
    // Predicated region
    $region2: #{tpu_custom_call.1} parent=1 // pred_check
      _
    $region3: #{tpu_custom_call.1} parent=1 // pred_check_branch
      %13 = sbr.rel (0) target = $region5
    $region4: #{tpu_custom_call.1} parent=1 // pred_region
      _
    $region5: #{tpu_custom_call.1} parent=1 // pred_fallthru
      _
    // Predicated region
    $region6: #{tpu_custom_call.1} parent=1 // pred_check
      _
    $region7: #{tpu_custom_call.1} parent=1 // pred_check_branch
      %15 = sbr.rel (0) target = $region9
    $region8: #{tpu_custom_call.1} parent=1 // pred_region
      _
    $region9: #{tpu_custom_call.1} parent=1 // pred_fallthru
      _
    // Predicated region
    $region10: #{tpu_custom_call.1} parent=1 // pred_check
      _
    $region11: #{tpu_custom_call.1} parent=1 // pred_check_branch
      %17 = sbr.rel (0) target = $region13
    $region12: #{tpu_custom_call.1} parent=1 // pred_region
      _
    $region13: #{tpu_custom_call.1} parent=1 // pred_fallthru
      _
    // Predicated region
    $region14: #{tpu_custom_call.1} parent=1 // pred_check
      _
    $region15: #{tpu_custom_call.1} parent=1 // pred_check_branch
      %19 = sbr.rel (0) target = $region17
    $region16: #{tpu_custom_call.1} parent=1 // pred_region
      _
    $region17: #{tpu_custom_call.1} parent=1 // pred_fallthru
      _
    // Predicated region
    $region18: #{tpu_custom_call.1} parent=1 // pred_check
      _
    $region19: #{tpu_custom_call.1} parent=1 // pred_check_branch
      %21 = sbr.rel (0) target = $region21
    $region20: #{tpu_custom_call.1} parent=1 // pred_region
      _
    $region21: #{tpu_custom_call.1} parent=1 // pred_fallthru
      _
    %v22 = vld [vmem:[%s1] sm:$0xff]
    %v23 = vld [vmem:[%s1 + $0x8] sm:$0xff]
    %v24 = vld [vmem:[%s1 + $0x10] sm:$0xff]
    %v25 = vld [vmem:[%s1 + $0x18] sm:$0xff]
    %v26 = vld [vmem:[%s0] sm:$0xf]
    %v27 = vld [vmem:[%s2] sm:$0xff]
    %v28 = vld [vmem:[%s2 + $0x8] sm:$0xff]
    %v29 = vld [vmem:[%s2 + $0x10] sm:$0xff]
    %v30 = vld [vmem:[%s2 + $0x18] sm:$0xff]
    %32 = vset.pattern.permute.xlu0 0
    %33 = vperm.xlu0 %32, %v27
    %v34 = vpop.permute.xlu0 %33
    %37 = vset.pattern.permute.xlu0 0
    %38 = vperm.xlu0 %37, %v28
    %v39 = vpop.permute.xlu0 %38
    %42 = vset.pattern.permute.xlu0 0
    %43 = vperm.xlu0 %42, %v29
    %v44 = vpop.permute.xlu0 %43
    %47 = vset.pattern.permute.xlu0 0
    %48 = vperm.xlu0 %47, %v30
    %v49 = vpop.permute.xlu0 %48
    %vm51 = vcmask 31744
    %v53 = vsel %vm51, %v22, 0
    %v56 = vsel %vm51, %v23, 0
    %v59 = vsel %vm51, %v24, 0
    %v62 = vsel %vm51, %v25, 0
    %vm64 = vcmask 1043456
    %v66 = vsel %vm64, %v26, 0
    %68 = vmatprep.subr.mxu0 0.0
    %69 = vmatpush1.msra.mxu0 %v66
    %70 = vmatprep.subr.mxu0 0.0
    %71 = vmatpush1.msra.mxu0 0.0
    %72 = vmatprep.subr.mxu0 0.0
    %73 = vmatpush1.msra.mxu0 0.0
    %74 = vmatprep.subr.mxu0 0.0
    %75 = vmatpush1.msra.mxu0 0.0
    %76 = vmatprep.subr.mxu0 0.0
    %77 = vmatpush1.msra.mxu0 0.0
    %78 = vmatprep.subr.mxu0 0.0
    %79 = vmatpush1.msra.mxu0 0.0
    %80 = vmatprep.subr.mxu0 0.0
    %81 = vmatpush1.msra.mxu0 0.0
    %82 = vmatprep.subr.mxu0 0.0
    %83 = vmatpush1.msra.mxu0 0.0
    %84 = vmatprep.subr.mxu0 0.0
    %85 = vmatpush1.msra.mxu0 0.0
    %86 = vmatprep.subr.mxu0 0.0
    %87 = vmatpush1.msra.mxu0 0.0
    %88 = vmatprep.subr.mxu0 0.0
    %89 = vmatpush1.msra.mxu0 0.0
    %90 = vmatprep.subr.mxu0 0.0
    %91 = vmatpush1.msra.mxu0 0.0
    %92 = vmatprep.subr.mxu0 0.0
    %93 = vmatpush1.msra.mxu0 0.0
    %94 = vmatprep.subr.mxu0 0.0
    %95 = vmatpush1.msra.mxu0 0.0
    %96 = vmatprep.subr.mxu0 0.0
    %97 = vmatpush1.msra.mxu0 0.0
    %98 = vmatprep.subr.mxu0 0.0
    %99 = vmatpush1.msra.mxu0 0.0
    %100 = vmatprep.subr.mxu0 0.0
    %101 = vmatpush1.msra.mxu0 0.0
    %102 = vmatprep.subr.mxu0 0.0
    %103 = vmatpush1.msra.mxu0 0.0
    %104 = vmatprep.subr.mxu0 0.0
    %105 = vmatpush1.msra.mxu0 0.0
    %106 = vmatprep.subr.mxu0 0.0
    %107 = vmatpush1.msra.mxu0 0.0
    %108 = vmatprep.subr.mxu0 0.0
    %109 = vmatpush1.msra.mxu0 0.0
    %110 = vmatprep.subr.mxu0 0.0
    %111 = vmatpush1.msra.mxu0 0.0
    %112 = vmatprep.subr.mxu0 0.0
    %113 = vmatpush1.msra.mxu0 0.0
    %114 = vmatprep.subr.mxu0 0.0
    %115 = vmatpush1.msra.mxu0 0.0
    %116 = vmatprep.subr.mxu0 0.0
    %117 = vmatpush1.msra.mxu0 0.0
    %118 = vmatprep.subr.mxu0 0.0
    %119 = vmatpush1.msra.mxu0 0.0
    %120 = vmatprep.subr.mxu0 0.0
    %121 = vmatpush1.msra.mxu0 0.0
    %122 = vmatprep.subr.mxu0 0.0
    %123 = vmatpush1.msra.mxu0 0.0
    %124 = vmatprep.subr.mxu0 0.0
    %125 = vmatpush1.msra.mxu0 0.0
    %126 = vmatprep.subr.mxu0 0.0
    %127 = vmatpush1.msra.mxu0 0.0
    %128 = vmatprep.subr.mxu0 0.0
    %129 = vmatpush1.msra.mxu0 0.0
    %130 = vmatprep.subr.mxu0 0.0
    %131 = vmatpush1.msra.mxu0 0.0
    %132 = vmatprep.mubr.f32.mxu0 0.0
    %133 = vmatmul.mubr.f32.gmra.mrb[0].mxu0 %v53
    %v134 = vpop.f32.mrb[0].mxu0
    %v135 = vadd.f32 %v34, %v134
    %v136 = vpop.f32.mrb[0].mxu0
    %137 = vmatprep.mubr.f32.mxu0 0.0
    %138 = vmatmul.mubr.f32.gmra.mrb[0].mxu0 %v56
    %v139 = vpop.f32.mrb[0].mxu0
    %v140 = vadd.f32 %v39, %v139
    %v141 = vpop.f32.mrb[0].mxu0
    %142 = vmatprep.mubr.f32.mxu0 0.0
    %143 = vmatmul.mubr.f32.gmra.mrb[0].mxu0 %v59
    %v144 = vpop.f32.mrb[0].mxu0
    %v145 = vadd.f32 %v44, %v144
    %v146 = vpop.f32.mrb[0].mxu0
    %147 = vmatprep.mubr.f32.mxu0 0.0
    %148 = vmatmul.mubr.f32.gmra.mrb[0].mxu0 %v62
    %v149 = vpop.f32.mrb[0].mxu0
    %v150 = vadd.f32 %v49, %v149
    %v151 = vpop.f32.mrb[0].mxu0
    %152 = vdwg.mxu0
    %v153 = vmax.f32 %v135, 0.0
    %v154 = vmax.f32 %v140, 0.0
    %v155 = vmax.f32 %v145, 0.0
    %v156 = vmax.f32 %v150, 0.0
    %v157 = vld [vmem:[%s3] sm:$0xff]
    %vm158 = vcmask 261120
    %v160 = vsel %vm158, %v157, 0
    %162 = vmatprep.subr.mxu0 0.0
    %163 = vmatpush1.msra.mxu0 %v153
    %164 = vmatprep.subr.mxu0 0.0
    %165 = vmatpush1.msra.mxu0 %v154
    %166 = vmatprep.subr.mxu0 0.0
    %167 = vmatpush1.msra.mxu0 %v155
    %168 = vmatprep.subr.mxu0 0.0
    %169 = vmatpush1.msra.mxu0 %v156
    %170 = vmatprep.subr.mxu0 0.0
    %171 = vmatpush1.msra.mxu0 0.0
    %172 = vmatprep.subr.mxu0 0.0
    %173 = vmatpush1.msra.mxu0 0.0
    %174 = vmatprep.subr.mxu0 0.0
    %175 = vmatpush1.msra.mxu0 0.0
    %176 = vmatprep.subr.mxu0 0.0
    %177 = vmatpush1.msra.mxu0 0.0
    %178 = vmatprep.subr.mxu0 0.0
    %179 = vmatpush1.msra.mxu0 0.0
    %180 = vmatprep.subr.mxu0 0.0
    %181 = vmatpush1.msra.mxu0 0.0
    %182 = vmatprep.subr.mxu0 0.0
    %183 = vmatpush1.msra.mxu0 0.0
    %184 = vmatprep.subr.mxu0 0.0
    %185 = vmatpush1.msra.mxu0 0.0
    %186 = vmatprep.subr.mxu0 0.0
    %187 = vmatpush1.msra.mxu0 0.0
    %188 = vmatprep.subr.mxu0 0.0
    %189 = vmatpush1.msra.mxu0 0.0
    %190 = vmatprep.subr.mxu0 0.0
    %191 = vmatpush1.msra.mxu0 0.0
    %192 = vmatprep.subr.mxu0 0.0
    %193 = vmatpush1.msra.mxu0 0.0
    %194 = vmatprep.subr.mxu0 0.0
    %195 = vmatpush1.msra.mxu0 0.0
    %196 = vmatprep.subr.mxu0 0.0
    %197 = vmatpush1.msra.mxu0 0.0
    %198 = vmatprep.subr.mxu0 0.0
    %199 = vmatpush1.msra.mxu0 0.0
    %200 = vmatprep.subr.mxu0 0.0
    %201 = vmatpush1.msra.mxu0 0.0
    %202 = vmatprep.subr.mxu0 0.0
    %203 = vmatpush1.msra.mxu0 0.0
    %204 = vmatprep.subr.mxu0 0.0
    %205 = vmatpush1.msra.mxu0 0.0
    %206 = vmatprep.subr.mxu0 0.0
    %207 = vmatpush1.msra.mxu0 0.0
    %208 = vmatprep.subr.mxu0 0.0
    %209 = vmatpush1.msra.mxu0 0.0
    %210 = vmatprep.subr.mxu0 0.0
    %211 = vmatpush1.msra.mxu0 0.0
    %212 = vmatprep.subr.mxu0 0.0
    %213 = vmatpush1.msra.mxu0 0.0
    %214 = vmatprep.subr.mxu0 0.0
    %215 = vmatpush1.msra.mxu0 0.0
    %216 = vmatprep.subr.mxu0 0.0
    %217 = vmatpush1.msra.mxu0 0.0
    %218 = vmatprep.subr.mxu0 0.0
    %219 = vmatpush1.msra.mxu0 0.0
    %220 = vmatprep.subr.mxu0 0.0
    %221 = vmatpush1.msra.mxu0 0.0
    %222 = vmatprep.subr.mxu0 0.0
    %223 = vmatpush1.msra.mxu0 0.0
    %224 = vmatprep.subr.mxu0 0.0
    %225 = vmatpush1.msra.mxu0 0.0
    %226 = vmatprep.mubr.f32.mxu0 0.0
    %227 = vmatmul.mubr.f32.gmra.mrb[0].mxu0 %v160
    %v228 = vpop.f32.mrb[0].mxu0
    %v229 = vadd.f32 0.0, %v228
    %v230 = vpop.f32.mrb[0].mxu0
    %231 = vdwg.mxu0
    %s232 = sld [smem:[#allocation2]]
    %v233 = vstv %s232
    %v234 = vadd.f32 %v229, %v233
    %vm235 = vcmask 57344
    %236 = vst.msk [vmem:[#allocation3] sm:$0x1] %vm235, %v234
    // Predicated region
    $region22: #{tpu_custom_call.1} parent=1 // pred_check
      _
    $region23: #{tpu_custom_call.1} parent=1 // pred_check_branch
      %238 = sbr.rel (0) target = $region25
    $region24: #{tpu_custom_call.1} parent=1 // pred_region
      %s240 = ssub.s32 16, 16
      %241 = vsyncadd [#allocation4], %s240
      %s243 = sshll.u32 [#allocation3], 4
      %s244 = int_to_ptr.vmem [resolvable:$true] %s243
      %246 = dma.vmem_to_hbm [thread:$0]  %s244, 16, %s5, [#allocation4]
    $region25: #{tpu_custom_call.1} parent=1 // pred_fallthru
      _
    // Predicated region
    $region26: #{tpu_custom_call.1} parent=1 // pred_check
      _
    $region27: #{tpu_custom_call.1} parent=1 // pred_check_branch
      %248 = sbr.rel (0) target = $region29
    $region28: #{tpu_custom_call.1} parent=1 // pred_region
      %249 = dma.done [#allocation4], 16
    $region29: #{tpu_custom_call.1} parent=1 // pred_fallthru
      _
    %250 = vsyncpa [#allocation4], 1

</llo_original>
